<compile_context>
chip_gen: v7x
topology: tpu7x:2x2x1
jax: 0.10.0
libtpu: 0.0.40
codegen_flags: <defaults>
</compile_context>

<pallas_src>
import functools

import jax
import jax.numpy as jnp
from jax.experimental import pallas as pl
from jax.experimental.pallas import tpu as pltpu


_TARGET_TILE_BYTES = 4 * 1024 * 1024   # ~4 MiB tiles -> ~16 MiB with double
                                       # buffering of input + output.
_VMEM_LIMIT_BYTES = 48 * 1024 * 1024   # explicit: > v5e's 16 MiB scoped
                                       # default, < v7x's 64 MiB physical.


def _round_down(x, m):
    return (x // m) * m


def _sublane_pack(dtype):
    """Native sublane packing: 8 for 32-bit, 16 for bf16, 32 for int8/fp8."""
    return max(8, 32 // jnp.dtype(dtype).itemsize)


def _int_thresholds(prob):
    """uint32 thresholds equivalent to the float comparisons on U[0,1).

    rdn == bits / 2^32, so (rdn < prob/2) <=> (bits < prob/2 * 2^32), etc.
    Note: int() truncation + clamping means prob/2 < 2^-32 collapses the
    pepper probability to 0 -- negligible for any realistic prob.
    """
    prob_zero = prob / 2.0
    prob_one = 1.0 - prob_zero
    two32 = 2 ** 32
    t_lo = int(min(max(prob_zero * two32, 0.0), two32 - 1))
    t_hi = int(min(max(prob_one * two32, 0.0), two32 - 1))
    return t_lo, t_hi


def _salt_pepper_select(bits_u32, x, t_lo, t_hi):
    t_lo = jnp.uint32(t_lo)
    t_hi = jnp.uint32(t_hi)
    out = jnp.where(bits_u32 > t_hi, jnp.zeros_like(x), x)   # pepper -> 0
    out = jnp.where(bits_u32 < t_lo, jnp.ones_like(x), out)  # salt -> 1 (wins)
    return out


def _sp_kernel_tpu_prng(seed_ref, x_ref, o_ref, *, t_lo, t_hi):
    # Unique PRNG stream per grid tile: (seed, tile_i, tile_j).  Scalar-slot
    # cost only.  NOTE: the exact noise pattern therefore depends on the
    # chosen tiling (reproducible for a fixed tiling + seed).
    pltpu.prng_seed(seed_ref[0], pl.program_id(0), pl.program_id(1))
    # TODO(synk): for bf16/int8 images draw half/quarter the bits and compare
    # in the matching narrow dtype to cut PRNG volume + mask repacking on v7x.
    bits = pltpu.bitcast(pltpu.prng_random_bits(x_ref.shape), jnp.uint32)
    o_ref[...] = _salt_pepper_select(bits, x_ref[...], t_lo, t_hi)


def _sp_kernel_ext_bits(bits_ref, x_ref, o_ref, *, t_lo, t_hi):
    o_ref[...] = _salt_pepper_select(bits_ref[...], x_ref[...], t_lo, t_hi)


def _choose_slab(total, pack):
    """Flatten to a lane-dense (rows, cols) slab, cols a multiple of 128."""
    candidates = (4096, 2048, 1024, 512, 256, 128)
    for lane_w in candidates:              # prefer full sublanes, no padding
        if total % lane_w == 0 and total // lane_w >= pack:
            return total // lane_w, lane_w, 0
    for lane_w in candidates:              # no padding, thin slab
        if total % lane_w == 0:
            return total // lane_w, lane_w, 0
    # Ragged size: pad the tail (elementwise op -> semantically free; the
    # padded tail is sliced off after the kernel).
    lane_w = 512 if total >= 512 * pack else 128
    chunk = lane_w * pack
    padded = ((total + chunk - 1) // chunk) * chunk
    return padded // lane_w, lane_w, padded - total


def _choose_block(rows, cols, dtype, target_bytes=_TARGET_TILE_BYTES):
    """Pick a dtype-packed, lane-dense (block_rows, block_cols) tile."""
    itemsize = jnp.dtype(dtype).itemsize
    pack = _sublane_pack(dtype)
    target_elems = max(1, target_bytes // itemsize)
    bc = min(cols, max(128, _round_down(max(target_elems // pack, 128), 128)))
    max_rows = max(1, target_elems // bc)
    if rows <= pack:
        br = rows                          # full extent when tiny
    else:
        br = max(pack, _round_down(min(rows, max_rows), pack))
    return br, bc, pack


def _ensure_two_tiles(rows, cols, br, bc, pack):
    """Give the 'parallel' grid >= 2 points so v7x's 2nd TC is not idle."""
    if pl.cdiv(rows, br) * pl.cdiv(cols, bc) >= 2:
        return br, bc
    if rows >= 2 * pack:
        br = max(pack, _round_down(pl.cdiv(rows, 2), pack))
    elif cols >= 256:
        bc = max(128, _round_down(cols // 2, 128))
    return br, bc


def sp_noise(image_nchw, prob, seed=0):
    """Apply salt-and-pepper noise to an NCHW image (matches torch semantics)."""
    n, c, h, w = image_nchw.shape
    total = n * c * h * w
    dtype = image_nchw.dtype
    itemsize = jnp.dtype(dtype).itemsize
    pack = _sublane_pack(dtype)

    rows, cols, pad = _choose_slab(total, pack)
    flat = image_nchw.reshape(-1)
    if pad:
        flat = jnp.pad(flat, (0, pad))
    x2d = flat.reshape(rows, cols)

    t_lo, t_hi = _int_thresholds(float(prob))
    br, bc, pack = _choose_block(rows, cols, dtype)
    br, bc = _ensure_two_tiles(rows, cols, br, bc, pack)
    grid = (pl.cdiv(rows, br), pl.cdiv(cols, bc))

    if jax.default_backend() == "tpu":
        kernel = functools.partial(_sp_kernel_tpu_prng, t_lo=t_lo, t_hi=t_hi)
        seed_arr = jnp.array([seed], dtype=jnp.int32)
        grid_spec = pltpu.PrefetchScalarGridSpec(
            num_scalar_prefetch=1,
            grid=grid,
            in_specs=[pl.BlockSpec((br, bc), lambda i, j, seed_ref: (i, j))],
            out_specs=pl.BlockSpec((br, bc), lambda i, j, seed_ref: (i, j)),
        )
        out2d = pl.pallas_call(
            kernel,
            out_shape=jax.ShapeDtypeStruct((rows, cols), dtype),
            grid_spec=grid_spec,
            # Operand 0 is the scalar-prefetch seed, so the image slab is
            # operand 1; donating it lets XLA reuse the buffer when dead.
            input_output_aliases={1: 0},
            compiler_params=pltpu.CompilerParams(
                dimension_semantics=("parallel", "parallel"),
                vmem_limit_bytes=_VMEM_LIMIT_BYTES),
            cost_estimate=pl.CostEstimate(
                flops=2 * rows * cols,
                transcendentals=0,
                bytes_accessed=2 * rows * cols * itemsize),
        )(seed_arr, x2d)
    else:
        # Portable fallback (CPU / interpreter): the in-kernel TPU PRNG has no
        # lowering off-TPU, so stream standard JAX PRNG bits in as an input.
        kernel = functools.partial(_sp_kernel_ext_bits, t_lo=t_lo, t_hi=t_hi)
        bits2d = jax.random.bits(jax.random.PRNGKey(seed), (rows, cols),
                                 dtype=jnp.uint32)
        block = pl.BlockSpec((br, bc), lambda i, j: (i, j))
        out2d = pl.pallas_call(
            kernel,
            out_shape=jax.ShapeDtypeStruct((rows, cols), dtype),
            grid=grid,
            in_specs=[block, block],
            out_specs=block,
        )(bits2d, x2d)

    out_flat = out2d.reshape(-1)
    if pad:
        out_flat = out_flat[:total]
    return out_flat.reshape(n, c, h, w)


class SP:
    """JAX/Pallas equivalent of the PyTorch SP module (no parameters)."""

    def __init__(self, prob):
        self.prob = prob

    def __call__(self, image_and_cover, seed=0):
        image = image_and_cover
        return sp_noise(image, self.prob, seed=seed)


if __name__ == "__main__":
    key = jax.random.PRNGKey(0)
    # Small NCHW input consistent with an image tensor: batch=2, channels=4, 16x16
    x = jax.random.uniform(key, (2, 4, 16, 16), dtype=jnp.float32)

    module = SP(prob=0.1)
    out = module(x, seed=123)
    out = jax.block_until_ready(out)

    # Sanity checks on the semantics (not bit-equality with torch's RNG):
    assert out.shape == x.shape and out.dtype == x.dtype
    is_zero = out == 0.0
    is_one = out == 1.0
    is_same = out == x
    # Every output element is either 0.0 (pepper), 1.0 (salt), or unchanged.
    assert bool(jnp.all(is_zero | is_one | is_same))
    # Roughly `prob` fraction of pixels altered (very loose bound, non-flaky).
    frac_altered = float(jnp.mean((is_zero | is_one) & ~is_same))
    assert 0.0 <= frac_altered <= 0.5

    print("KERNEL_OK")
</pallas_src>

<mosaic_0001>
module attributes {stable_mosaic.version = 11 : i64} {
  func.func @_sp_kernel_ext_bits(%arg0: i32, %arg1: i32, %arg2: memref<8x128xi32, #tpu.memory_space<vmem>>, %arg3: memref<8x128xf32, #tpu.memory_space<vmem>>, %arg4: memref<8x128xf32, #tpu.memory_space<vmem>>) attributes {dimension_semantics = [#tpu.dimension_semantics<arbitrary>, #tpu.dimension_semantics<arbitrary>], iteration_bounds = array<i64: 1, 2>, scalar_prefetch = 0 : i64, scratch_operands = 0 : i64, tpu.core_type = #tpu.core_type<tc>, window_params = [{transform_indices = @transform_0, window_bounds = array<i64: 8, 128>}, {transform_indices = @transform_1, window_bounds = array<i64: 8, 128>}, {transform_indices = @transform_2, window_bounds = array<i64: 8, 128>}]} {
    %c0 = arith.constant 0 : index
    %c0_0 = arith.constant 0 : index
    %0 = vector.load %arg2[%c0, %c0_0] : memref<8x128xi32, #tpu.memory_space<vmem>>, vector<8x128xi32>
    %c0_1 = arith.constant 0 : index
    %c0_2 = arith.constant 0 : index
    %1 = vector.load %arg3[%c0_1, %c0_2] : memref<8x128xf32, #tpu.memory_space<vmem>>, vector<8x128xf32>
    %c-214748365_i32 = arith.constant -214748365 : i32
    %2 = vector.broadcast %c-214748365_i32 : i32 to vector<8x128xi32>
    %3 = arith.cmpi ugt, %0, %2 : vector<8x128xi32>
    %cst = arith.constant 0.000000e+00 : f32
    %4 = vector.broadcast %cst : f32 to vector<8x128xf32>
    %5 = arith.select %3, %4, %1 : vector<8x128xi1>, vector<8x128xf32>
    %c214748364_i32 = arith.constant 214748364 : i32
    %6 = vector.broadcast %c214748364_i32 : i32 to vector<8x128xi32>
    %7 = arith.cmpi ult, %0, %6 : vector<8x128xi32>
    %cst_3 = arith.constant 1.000000e+00 : f32
    %8 = vector.broadcast %cst_3 : f32 to vector<8x128xf32>
    %9 = arith.select %7, %8, %5 : vector<8x128xi1>, vector<8x128xf32>
    %c0_4 = arith.constant 0 : index
    %c0_5 = arith.constant 0 : index
    %10 = vector.load %arg4[%c0_4, %c0_5] : memref<8x128xf32, #tpu.memory_space<vmem>>, vector<8x128xf32>
    tpu.vector_store %arg4[%c0_4, %c0_5], %9 {strides = array<i32>} : memref<8x128xf32, #tpu.memory_space<vmem>>, vector<8x128xf32>,
    return
  }
  func.func @transform_0(%arg0: i32, %arg1: i32) -> (i32, i32) {
    %c0_i32 = arith.constant 0 : i32
    return %arg0, %arg1 : i32, i32
  }
  func.func @transform_1(%arg0: i32, %arg1: i32) -> (i32, i32) {
    %c0_i32 = arith.constant 0 : i32
    return %arg0, %arg1 : i32, i32
  }
  func.func @transform_2(%arg0: i32, %arg1: i32) -> (i32, i32) {
    %c0_i32 = arith.constant 0 : i32
    return %arg0, %arg1 : i32, i32
  }
}

</mosaic_0001>

<llo_original>
// kernel: tpu_custom_call.1
$region0: #{tpu_custom_call.1}
  #allocation0 [shape = 'u32[]', space=smem, size = 0x4, offset = 0x4, fixed_abs, tag = 'smem constant byte address 0x4 - core index']
  #allocation1 [shape = 'u32[144,128]{1,0:T(1,128)}', space=vmem, size = 0x12000, scoped, tag = 'internal scratch']
  %s0 = inlined_call_operand.hbm [shape: u32[8,256], index: 0, kind: input, shape index: {}]
  %s1 = inlined_call_operand.hbm [shape: f32[8,256], index: 1, kind: input, shape index: {}]
  %s2 = inlined_call_operand.hbm [shape: f32[8,256], index: 2, kind: output, shape index: {}]
  %s3 = sld [smem:[#allocation0]]
  $region49: #{tpu_custom_call.1} parent=0
    _
  %s5 = ssub.s32 1, %s3
  %s6 = scalar_select 0, %s5, %s3
  $region1: #{tpu_custom_call.1} parent=0
    #allocation2 [shape = 'u8[8192]{0}', space=vmem, size = 0x2000, scoped, tag = 'input window, operand 0']
    #allocation3 [shape = 's32[2]{0}', space=sflag, size = 0x8, scoped, tag = 'scoped memory for tpu_custom_call.1']
    #allocation4 [shape = 's32[2]{0}', space=sflag, size = 0x8, scoped, tag = 'scoped memory for tpu_custom_call.1']
    #allocation5 [shape = 'u8[8192]{0}', space=vmem, size = 0x2000, scoped, tag = 'input window, operand 1']
    #allocation6 [shape = 's32[2]{0}', space=sflag, size = 0x8, scoped, tag = 'scoped memory for tpu_custom_call.1']
    #allocation7 [shape = 'u8[8192]{0}', space=vmem, size = 0x2000, scoped, tag = 'output window, operand 0']
    %7 = vsyncpa [#allocation3], 0
    %s8 = scalar_lea.sflag [#allocation3], 1
    %9 = vsyncpa %s8, 0
    %10 = vsyncpa [#allocation6], 0
    %s11 = scalar_lea.sflag [#allocation6], 1
    %12 = vsyncpa %s11, 0
    %13 = vsyncpa [#allocation4], 0
    %s14 = scalar_lea.sflag [#allocation4], 1
    %15 = vsyncpa %s14, 0
    loop: start=0, step=1, limit=4
    $region2: #{tpu_custom_call.1} parent=1 // loop_pre_header
      _
    $region3: #{tpu_custom_call.1} parent=1 // loop_header
      %s17 = sphi 0, %s21
      %p18 = scmp.ge.s32.totalorder %s17, 4
      %s24 = sphi 0, %s36
      %s25 = sphi 0, %s32
      %s26 = sphi 0, %s24
      %s27 = sphi 0, %s25
      %s28 = sphi 0, %s26
      %s29 = sphi 0, %s27
      %s41 = sphi 0, %s43
      %s44 = sphi 0, %s41
      %s45 = sphi 0, %s44
      %s61 = sphi 0, %s45
      %s69 = sphi 0, %s71
      %s72 = sphi 0, %s69
      %s73 = sphi 0, %s72
      %s89 = sphi 0, %s73
      %s97 = sphi 0, %s99
      %s100 = sphi 0, %s97
      %s101 = sphi 0, %s100
      %s117 = sphi 0, %s101
    $region4: #{tpu_custom_call.1} parent=1 // loop_header_branch
      %20 = sbr.rel (%p18) target = $region8
    $region5: #{tpu_custom_call.1} parent=1 // loop_body
      %s22 = ssub.s32 %s17, 1
      %s23 = ssub.s32 %s17, 2
      %s30 = sadd.s32 1, %s25
      %p31 = scmp.ge.s32.totalorder %s30, 2
      %s32 = scalar_select %p31, 0, %s30
      %s33 = sadd.s32 1, %s24
      %s34 = scalar_select %p31, %s33, %s24
      %p35 = scmp.ge.s32.totalorder %s34, 1
      %s36 = scalar_select %p35, 0, %s34
      %s37 = ssub.s32 %s24, %s36
      %s38 = ssub.s32 %s25, %s32
      %s39 = sor.u32 %s37, %s38
      %p40 = scmp.eq.s32.totalorder %s39, 0
      %s42 = sadd.s32 %s41, 1
      %s43 = scalar_select %p40, %s41, %s42
      %p46 = pneg %p40
      %p47 = scmp.eq.s32.totalorder %s17, 1
      %p48 = por %p46, %p47
      %p49 = scmp.ne.s32.totalorder %s41, %s44
      %p50 = scmp.eq.s32.totalorder %s17, 0
      %p51 = por %p49, %p50
      %p52 = scmp.ne.s32.totalorder %s41, %s44
      %p53 = scmp.eq.s32.totalorder %s22, 1
      %p54 = por %p52, %p53
      %p55 = scmp.ne.s32.totalorder %s44, %s45
      %p56 = scmp.eq.s32.totalorder %s22, 0
      %p57 = por %p55, %p56
      %p58 = scmp.ne.s32.totalorder %s44, %s45
      %p59 = scmp.eq.s32.totalorder %s23, 1
      %p60 = por %p58, %p59
      %p62 = scmp.ne.s32.totalorder %s45, %s61
      %p63 = scmp.eq.s32.totalorder %s23, 0
      %p64 = por %p62, %p63
      %s65 = ssub.s32 %s24, %s36
      %s66 = ssub.s32 %s25, %s32
      %s67 = sor.u32 %s65, %s66
      %p68 = scmp.eq.s32.totalorder %s67, 0
      %s70 = sadd.s32 %s69, 1
      %s71 = scalar_select %p68, %s69, %s70
      %p74 = pneg %p68
      %p75 = scmp.eq.s32.totalorder %s17, 1
      %p76 = por %p74, %p75
      %p77 = scmp.ne.s32.totalorder %s69, %s72
      %p78 = scmp.eq.s32.totalorder %s17, 0
      %p79 = por %p77, %p78
      %p80 = scmp.ne.s32.totalorder %s69, %s72
      %p81 = scmp.eq.s32.totalorder %s22, 1
      %p82 = por %p80, %p81
      %p83 = scmp.ne.s32.totalorder %s72, %s73
      %p84 = scmp.eq.s32.totalorder %s22, 0
      %p85 = por %p83, %p84
      %p86 = scmp.ne.s32.totalorder %s72, %s73
      %p87 = scmp.eq.s32.totalorder %s23, 1
      %p88 = por %p86, %p87
      %p90 = scmp.ne.s32.totalorder %s73, %s89
      %p91 = scmp.eq.s32.totalorder %s23, 0
      %p92 = por %p90, %p91
      %s93 = ssub.s32 %s24, %s36
      %s94 = ssub.s32 %s25, %s32
      %s95 = sor.u32 %s93, %s94
      %p96 = scmp.eq.s32.totalorder %s95, 0
      %s98 = sadd.s32 %s97, 1
      %s99 = scalar_select %p96, %s97, %s98
      %p102 = pneg %p96
      %p103 = scmp.eq.s32.totalorder %s17, 1
      %p104 = por %p102, %p103
      %p105 = scmp.ne.s32.totalorder %s97, %s100
      %p106 = scmp.eq.s32.totalorder %s17, 0
      %p107 = por %p105, %p106
      %p108 = scmp.ne.s32.totalorder %s97, %s100
      %p109 = scmp.eq.s32.totalorder %s22, 1
      %p110 = por %p108, %p109
      %p111 = scmp.ne.s32.totalorder %s100, %s101
      %p112 = scmp.eq.s32.totalorder %s22, 0
      %p113 = por %p111, %p112
      %p114 = scmp.ne.s32.totalorder %s100, %s101
      %p115 = scmp.eq.s32.totalorder %s23, 1
      %p116 = por %p114, %p115
      %p118 = scmp.ne.s32.totalorder %s101, %s117
      %p119 = scmp.eq.s32.totalorder %s23, 0
      %p120 = por %p118, %p119
      %p121 = scmp.le.s32.totalorder 1, %s17
      %p122 = scmp.lt.s32.totalorder %s17, 3
      %p123 = pnand %p121, %p122
      %p124 = pneg %p123
      // Predicated region
      $region9: #{tpu_custom_call.1} parent=5 // pred_check
        _
      $region10: #{tpu_custom_call.1} parent=5 // pred_check_branch
        %126 = sbr.rel (%p123) target = $region12
      $region11: #{tpu_custom_call.1} parent=5 // pred_region
        %s127 = ssub.s32 %s17, 1
      $region12: #{tpu_custom_call.1} parent=5 // pred_fallthru
        _
      %p128 = scmp.lt.s32.totalorder %s17, 2
      // Predicated region
      $region13: #{tpu_custom_call.1} parent=5 // pred_check
        %p129 = pneg %p128
      $region14: #{tpu_custom_call.1} parent=5 // pred_check_branch
        %131 = sbr.rel (%p129) target = $region16
      $region15: #{tpu_custom_call.1} parent=5 // pred_region
        // Predicated region
        $region17: #{tpu_custom_call.1} parent=15 // pred_check
          %p132 = pneg %p51
        $region18: #{tpu_custom_call.1} parent=15 // pred_check_branch
          %134 = sbr.rel (%p132) target = $region20
        $region19: #{tpu_custom_call.1} parent=15 // pred_region
          %s135 = sand.u32 %s41, 1
          %s136 = scalar_lea.sflag [#allocation3], %s135
          %s137 = sand.u32 %s41, 1
          %s138 = smul.addr %s137, 8
          %s139 = scalar_lea.vmem [#allocation2], %s138
          %s141 = ssub.s32 128, 128
          %142 = vsyncadd %s136, %s141
          %s143 = smul.addr %s24, 2
          %s144 = sadd.s32 %s25, %s143
          %s145 = smul.addr %s144, 128
          %s146 = scalar_lea.hbm %s0, %s145
          %s148 = sshll.u32 %s139, 4
          %s149 = int_to_ptr.vmem [resolvable:$true] %s148
          %151 = dma.hbm_to_vmem [thread:$0]  %s146, 128, %s149, %s136
        $region20: #{tpu_custom_call.1} parent=15 // pred_fallthru
          _
        // Predicated region
        $region21: #{tpu_custom_call.1} parent=15 // pred_check
          %p152 = pneg %p79
        $region22: #{tpu_custom_call.1} parent=15 // pred_check_branch
          %154 = sbr.rel (%p152) target = $region24
        $region23: #{tpu_custom_call.1} parent=15 // pred_region
          %s155 = sand.u32 %s69, 1
          %s156 = scalar_lea.sflag [#allocation6], %s155
          %s157 = sand.u32 %s69, 1
          %s158 = smul.addr %s157, 8
          %s159 = scalar_lea.vmem [#allocation5], %s158
          %s161 = ssub.s32 128, 128
          %162 = vsyncadd %s156, %s161
          %s163 = smul.addr %s24, 2
          %s164 = sadd.s32 %s25, %s163
          %s165 = smul.addr %s164, 128
          %s166 = scalar_lea.hbm %s1, %s165
          %s168 = sshll.u32 %s159, 4
          %s169 = int_to_ptr.vmem [resolvable:$true] %s168
          %171 = dma.hbm_to_vmem [thread:$0]  %s166, 128, %s169, %s156
        $region24: #{tpu_custom_call.1} parent=15 // pred_fallthru
          _
      $region16: #{tpu_custom_call.1} parent=5 // pred_fallthru
        _
      %p172 = scmp.le.s32.totalorder 1, %s17
      %p173 = scmp.lt.s32.totalorder %s17, 3
      %p174 = pnand %p172, %p173
      %p175 = pneg %p174
      // Predicated region
      $region25: #{tpu_custom_call.1} parent=5 // pred_check
        _
      $region26: #{tpu_custom_call.1} parent=5 // pred_check_branch
        %177 = sbr.rel (%p174) target = $region28
      $region27: #{tpu_custom_call.1} parent=5 // pred_region
        %s178 = ssub.s32 %s17, 1
        %s179 = sand.u32 %s44, 1
        %s180 = scalar_lea.sflag [#allocation3], %s179
        %s181 = sand.u32 %s44, 1
        %s182 = smul.addr %s181, 8
        %s183 = scalar_lea.vmem [#allocation2], %s182
        // Predicated region
        $region29: #{tpu_custom_call.1} parent=27 // pred_check
          %p184 = pneg %p57
        $region30: #{tpu_custom_call.1} parent=27 // pred_check_branch
          %186 = sbr.rel (%p184) target = $region32
        $region31: #{tpu_custom_call.1} parent=27 // pred_region
          %187 = dma.done %s180, 128
        $region32: #{tpu_custom_call.1} parent=27 // pred_fallthru
          _
        %s188 = sand.u32 %s72, 1
        %s189 = scalar_lea.sflag [#allocation6], %s188
        %s190 = sand.u32 %s72, 1
        %s191 = smul.addr %s190, 8
        %s192 = scalar_lea.vmem [#allocation5], %s191
        // Predicated region
        $region33: #{tpu_custom_call.1} parent=27 // pred_check
          %p193 = pneg %p85
        $region34: #{tpu_custom_call.1} parent=27 // pred_check_branch
          %195 = sbr.rel (%p193) target = $region36
        $region35: #{tpu_custom_call.1} parent=27 // pred_region
          %196 = dma.done %s189, 128
        $region36: #{tpu_custom_call.1} parent=27 // pred_fallthru
          _
        %s197 = sand.u32 %s44, 1
        %s198 = scalar_lea.sflag [#allocation3], %s197
        %s199 = sand.u32 %s44, 1
        %s200 = smul.addr %s199, 8
        %s201 = scalar_lea.vmem [#allocation2], %s200
        %p202 = pneg %p57
        %p203 = pneg %p54
        %s204 = sand.u32 %s72, 1
        %s205 = scalar_lea.sflag [#allocation6], %s204
        %s206 = sand.u32 %s72, 1
        %s207 = smul.addr %s206, 8
        %s208 = scalar_lea.vmem [#allocation5], %s207
        %p209 = pneg %p85
        %p210 = pneg %p82
        %p211 = pneg %p113
        %p212 = pneg %p110
        %s213 = sand.u32 %s100, 1
        %s214 = scalar_lea.sflag [#allocation4], %s213
        %s215 = sand.u32 %s100, 1
        %s216 = smul.addr %s215, 8
        %s217 = scalar_lea.vmem [#allocation7], %s216
        %v218 = vld [vmem:[%s183] sm:$0xff]
        %v219 = vld [vmem:[%s192] sm:$0xff]
        %vm220 = vcmp.gt.u32.totalorder %v218, 4080218931
        %v221 = vsel %vm220, 0.0, %v219
        %vm222 = vcmp.lt.u32.totalorder %v218, 214748364
        %v223 = vsel %vm222, 1.0, %v221
        %224 = vst [vmem:[%s217] sm:$0xff] %v223
        %s225 = sand.u32 %s100, 1
        %s226 = scalar_lea.sflag [#allocation4], %s225
        %s227 = sand.u32 %s100, 1
        %s228 = smul.addr %s227, 8
        %s229 = scalar_lea.vmem [#allocation7], %s228
        // Predicated region
        $region37: #{tpu_custom_call.1} parent=27 // pred_check
          %p230 = pneg %p110
        $region38: #{tpu_custom_call.1} parent=27 // pred_check_branch
          %232 = sbr.rel (%p230) target = $region40
        $region39: #{tpu_custom_call.1} parent=27 // pred_region
          %s234 = ssub.s32 128, 128
          %235 = vsyncadd %s226, %s234
          %s236 = smul.addr %s26, 2
          %s237 = sadd.s32 %s27, %s236
          %s238 = smul.addr %s237, 128
          %s239 = scalar_lea.hbm %s2, %s238
          %s241 = sshll.u32 %s229, 4
          %s242 = int_to_ptr.vmem [resolvable:$true] %s241
          %244 = dma.vmem_to_hbm [thread:$0]  %s242, 128, %s239, %s226
        $region40: #{tpu_custom_call.1} parent=27 // pred_fallthru
          _
      $region28: #{tpu_custom_call.1} parent=5 // pred_fallthru
        _
      %p245 = scmp.le.s32.totalorder 2, %s17
      // Predicated region
      $region41: #{tpu_custom_call.1} parent=5 // pred_check
        %p246 = pneg %p245
      $region42: #{tpu_custom_call.1} parent=5 // pred_check_branch
        %248 = sbr.rel (%p246) target = $region44
      $region43: #{tpu_custom_call.1} parent=5 // pred_region
        %s249 = ssub.s32 %s17, 2
        // Predicated region
        $region45: #{tpu_custom_call.1} parent=43 // pred_check
          %p250 = pneg %p116
        $region46: #{tpu_custom_call.1} parent=43 // pred_check_branch
          %252 = sbr.rel (%p250) target = $region48
        $region47: #{tpu_custom_call.1} parent=43 // pred_region
          %s253 = sand.u32 %s101, 1
          %s254 = scalar_lea.sflag [#allocation4], %s253
          %s255 = sand.u32 %s101, 1
          %s256 = smul.addr %s255, 8
          %s257 = scalar_lea.vmem [#allocation7], %s256
          %258 = dma.done %s254, 128
        $region48: #{tpu_custom_call.1} parent=43 // pred_fallthru
          _
      $region44: #{tpu_custom_call.1} parent=5 // pred_fallthru
        _
    $region6: #{tpu_custom_call.1} parent=1 // loop_footer
      %s21 = sadd.s32 1, %s17
    $region7: #{tpu_custom_call.1} parent=1 // loop_footer_branch
      %16 = sbr.rel target = $region3
    $region8: #{tpu_custom_call.1} parent=1 // loop_exit
      _
    %259 = vsyncpa [#allocation3], 1
    %s260 = scalar_lea.sflag [#allocation3], 1
    %261 = vsyncpa %s260, 1
    %262 = vsyncpa [#allocation6], 1
    %s263 = scalar_lea.sflag [#allocation6], 1
    %264 = vsyncpa %s263, 1
    %265 = vsyncpa [#allocation4], 1
    %s266 = scalar_lea.sflag [#allocation4], 1
    %267 = vsyncpa %s266, 1

</llo_original>
